<compile_context>
chip_gen: v7x
topology: tpu7x:2x2x1
jax: 0.10.0
libtpu: 0.0.40
codegen_flags: <defaults>
</compile_context>

<pallas_src>
import jax
import jax.numpy as jnp
from jax.experimental import pallas as pl
from jax.experimental.pallas import tpu as pltpu

EPS = 1e-5
F_PAD = 128  # lane-dense width for every weight tile / activation slab

_VMEM_SPEC = pl.BlockSpec(memory_space=pltpu.MemorySpace.VMEM)


# ----------------------------------------------------------------------------
# Fused kernel: entire AE forward in one invocation, everything in VMEM.
#   w_ref   : (8, 128, 128)  [W1, W2, W3, Wz, W4, W5, W6, Wx]   (pre-transposed)
#   vec_ref : (14, 128)      [g1,b1, g2,b2, g3,b3, bz, g4,b4, g5,b5, g6,b6, bx]
# ----------------------------------------------------------------------------
def fused_ae_kernel(x_ref, w_ref, vec_ref, xbar_ref, z_ref):
    inv_b = 1.0 / x_ref.shape[0]  # static batch size

    def vec(i):                      # static slice -> (1, 128) view/load
        return vec_ref[i:i + 1, :]

    def lbr(h, wi, gi, bi):
        # Pre-BN bias omitted: it cancels under batch-mean subtraction.
        y = jnp.dot(h, w_ref[wi], preferred_element_type=jnp.float32)
        # Single-pass stats: mean and E[y^2] from one traversal of y.
        s1 = jnp.sum(y, axis=0, keepdims=True)
        s2 = jnp.sum(y * y, axis=0, keepdims=True)
        mean = s1 * inv_b
        var = jnp.maximum(s2 * inv_b - mean * mean, 0.0)  # biased variance
        scale = vec(gi) * jax.lax.rsqrt(var + EPS)
        shift = vec(bi) - mean * scale
        return jnp.maximum(y * scale + shift, 0.0)

    # ---- encoder ----
    h = lbr(x_ref[...], 0, 0, 1)
    h = lbr(h, 1, 2, 3)
    h = lbr(h, 2, 4, 5)

    # ---- bottleneck (bias kept — no BN follows) ----
    z = jnp.dot(h, w_ref[3], preferred_element_type=jnp.float32) + vec(6)
    z_ref[...] = z.astype(z_ref.dtype)

    # ---- decoder ----
    h = lbr(z, 4, 7, 8)
    h = lbr(h, 5, 9, 10)
    h = lbr(h, 6, 11, 12)

    # ---- output layer (bias kept) ----
    xbar_ref[...] = (jnp.dot(h, w_ref[7], preferred_element_type=jnp.float32)
                     + vec(13)).astype(xbar_ref.dtype)


# ----------------------------------------------------------------------------
# One-time parameter packing (NOT inside the per-call forward path).
# ----------------------------------------------------------------------------
def _pad2(a, rows, cols):
    return jnp.pad(a, ((0, rows - a.shape[0]), (0, cols - a.shape[1])))


def prepare_packed_params(params):
    """Pad + pack all parameters once.  Returns (w_stack, vec_stack)."""
    def pw(w):
        return _pad2(w, F_PAD, F_PAD)

    def pv(v):
        return _pad2(v, 1, F_PAD)

    w_stack = jnp.stack([
        pw(params["enc_1"][0]), pw(params["enc_2"][0]), pw(params["enc_3"][0]),
        pw(params["z_layer"][0]),
        pw(params["dec_1"][0]), pw(params["dec_2"][0]), pw(params["dec_3"][0]),
        pw(params["x_bar_layer"][0]),
    ])  # (8, 128, 128) fp32

    vec_stack = jnp.concatenate([
        pv(params["BN1"][0]), pv(params["BN1"][1]),
        pv(params["BN2"][0]), pv(params["BN2"][1]),
        pv(params["BN3"][0]), pv(params["BN3"][1]),
        pv(params["z_layer"][1]),
        pv(params["BN4"][0]), pv(params["BN4"][1]),
        pv(params["BN5"][0]), pv(params["BN5"][1]),
        pv(params["BN6"][0]), pv(params["BN6"][1]),
        pv(params["x_bar_layer"][1]),
    ], axis=0)  # (14, 128) fp32
    # Pre-BN Linear biases (enc_1..3, dec_1..3) intentionally not packed:
    # they cancel exactly under the batch-mean subtraction in BN.

    return jax.device_put(w_stack), jax.device_put(vec_stack)


# ----------------------------------------------------------------------------
# Forward pass (single fused Pallas call).  Returns padded (B,128) slabs;
# the narrow API-shaped views are taken lazily by the caller.
# ----------------------------------------------------------------------------
@jax.jit
def ae_forward_padded(w_stack, vec_stack, x):
    B = x.shape[0]
    x_pad = jnp.pad(x, ((0, 0), (0, F_PAD - x.shape[1])))

    cost = pl.CostEstimate(
        flops=8 * 2 * B * F_PAD * F_PAD,
        transcendentals=6 * F_PAD,
        bytes_accessed=4 * (B * F_PAD               # x
                            + 8 * F_PAD * F_PAD     # weight stack
                            + 14 * F_PAD            # gamma/beta/bias stack
                            + 2 * B * F_PAD),       # two outputs
    )

    xbar_pad, z_pad = pl.pallas_call(
        fused_ae_kernel,
        out_shape=(jax.ShapeDtypeStruct((B, F_PAD), jnp.float32),
                   jax.ShapeDtypeStruct((B, F_PAD), jnp.float32)),
        in_specs=[_VMEM_SPEC, _VMEM_SPEC, _VMEM_SPEC],
        out_specs=(_VMEM_SPEC, _VMEM_SPEC),
        compiler_params=pltpu.CompilerParams(
            vmem_limit_bytes=32 * 1024 * 1024),
        cost_estimate=cost,
    )(x_pad, w_stack, vec_stack)

    return xbar_pad, z_pad


def ae_forward(params_packed, x, n_input, n_z):
    xbar_pad, z_pad = ae_forward_padded(*params_packed, x)
    return xbar_pad[:, :n_input], z_pad[:, :n_z]


# ----------------------------------------------------------------------------
# Parameter construction (deterministic, synthetic)
# ----------------------------------------------------------------------------
def init_linear(key, n_in, n_out):
    kw, kb = jax.random.split(key)
    bound = 1.0 / jnp.sqrt(jnp.float32(n_in))
    w = jax.random.uniform(kw, (n_in, n_out), jnp.float32, -bound, bound)
    b = jax.random.uniform(kb, (1, n_out), jnp.float32, -bound, bound)
    return w, b


def init_bn(key, n):
    kg, kb = jax.random.split(key)
    gamma = 1.0 + 0.1 * jax.random.normal(kg, (1, n), jnp.float32)
    beta = 0.1 * jax.random.normal(kb, (1, n), jnp.float32)
    return gamma, beta


def make_params(key, n_enc_1, n_enc_2, n_enc_3, n_dec_1, n_dec_2, n_dec_3,
                n_input, n_z):
    keys = jax.random.split(key, 14)
    p = {}
    p["enc_1"] = init_linear(keys[0], n_input, n_enc_1)
    p["BN1"] = init_bn(keys[1], n_enc_1)
    p["enc_2"] = init_linear(keys[2], n_enc_1, n_enc_2)
    p["BN2"] = init_bn(keys[3], n_enc_2)
    p["enc_3"] = init_linear(keys[4], n_enc_2, n_enc_3)
    p["BN3"] = init_bn(keys[5], n_enc_3)
    p["z_layer"] = init_linear(keys[6], n_enc_3, n_z)
    p["dec_1"] = init_linear(keys[7], n_z, n_dec_1)
    p["BN4"] = init_bn(keys[8], n_dec_1)
    p["dec_2"] = init_linear(keys[9], n_dec_1, n_dec_2)
    p["BN5"] = init_bn(keys[10], n_dec_2)
    p["dec_3"] = init_linear(keys[11], n_dec_2, n_dec_3)
    p["BN6"] = init_bn(keys[12], n_dec_3)
    p["x_bar_layer"] = init_linear(keys[13], n_dec_3, n_input)
    return p


# Pure-JAX reference (keeps the pre-BN biases and two-pass variance; the
# allclose check proves the kernel's bias elision + single-pass var are exact
# to tolerance).
def ae_forward_ref(params, x):
    def lbr(h, w, b, g, bt):
        y = h @ w + b
        m = jnp.mean(y, axis=0, keepdims=True)
        v = jnp.mean((y - m) ** 2, axis=0, keepdims=True)
        return jnp.maximum((y - m) / jnp.sqrt(v + EPS) * g + bt, 0.0)

    h = lbr(x, *params["enc_1"], *params["BN1"])
    h = lbr(h, *params["enc_2"], *params["BN2"])
    h = lbr(h, *params["enc_3"], *params["BN3"])
    z = h @ params["z_layer"][0] + params["z_layer"][1]
    h = lbr(z, *params["dec_1"], *params["BN4"])
    h = lbr(h, *params["dec_2"], *params["BN5"])
    h = lbr(h, *params["dec_3"], *params["BN6"])
    x_bar = h @ params["x_bar_layer"][0] + params["x_bar_layer"][1]
    return x_bar, z


if __name__ == "__main__":
    # Small AE configuration (B multiple of 8 keeps fp32 sublane alignment).
    n_input, n_z = 32, 8
    n_enc_1, n_enc_2, n_enc_3 = 64, 64, 32
    n_dec_1, n_dec_2, n_dec_3 = 32, 64, 64
    batch = 8

    key = jax.random.PRNGKey(0)
    k_params, k_x = jax.random.split(key)
    params = make_params(k_params, n_enc_1, n_enc_2, n_enc_3,
                         n_dec_1, n_dec_2, n_dec_3, n_input, n_z)
    x = jax.random.normal(k_x, (batch, n_input), jnp.float32)

    # One-time pad + pack (outside the per-call forward path).
    packed = prepare_packed_params(params)
    jax.block_until_ready(packed)

    x_bar, z = ae_forward(packed, x, n_input, n_z)
    jax.block_until_ready((x_bar, z))

    x_bar_ref, z_ref = ae_forward_ref(params, x)
    assert x_bar.shape == (batch, n_input) and z.shape == (batch, n_z)
    assert jnp.allclose(x_bar, x_bar_ref, atol=1e-4, rtol=1e-4)
    assert jnp.allclose(z, z_ref, atol=1e-4, rtol=1e-4)

    print("KERNEL_OK")
</pallas_src>

<mosaic_0001>
module attributes {stable_mosaic.version = 11 : i64} {
  func.func @fused_ae_kernel(%arg0: memref<8x128xf32, #tpu.memory_space<vmem>>, %arg1: memref<8x128x128xf32, #tpu.memory_space<vmem>>, %arg2: memref<14x128xf32, #tpu.memory_space<vmem>>, %arg3: memref<8x128xf32, #tpu.memory_space<vmem>>, %arg4: memref<8x128xf32, #tpu.memory_space<vmem>>) attributes {dimension_semantics = [], scalar_prefetch = 0 : i64, scratch_operands = 0 : i64, tpu.core_type = #tpu.core_type<tc>} {
    %c0 = arith.constant 0 : index
    %c0_0 = arith.constant 0 : index
    %0 = vector.load %arg0[%c0, %c0_0] : memref<8x128xf32, #tpu.memory_space<vmem>>, vector<8x128xf32>
    %c0_1 = arith.constant 0 : index
    %c0_2 = arith.constant 0 : index
    %c0_3 = arith.constant 0 : index
    %1 = vector.load %arg1[%c0_1, %c0_2, %c0_3] : memref<8x128x128xf32, #tpu.memory_space<vmem>>, vector<1x128x128xf32>
    %2 = vector.shape_cast %1 : vector<1x128x128xf32> to vector<128x128xf32>
    %cst = arith.constant dense<0.000000e+00> : vector<8x128xf32>
    %3 = tpu.matmul %0, %2, %cst {dimension_numbers = #tpu.dot_dimension_numbers<[1], [0], [0], [1], [0, 0, 1, 1], [], []>} : vector<8x128xf32>, vector<128x128xf32>, vector<8x128xf32> -> vector<8x128xf32>
    %cst_4 = arith.constant dense<0.000000e+00> : vector<128xf32>
    %4 = vector.multi_reduction <add>, %3, %cst_4 [0] : vector<8x128xf32> to vector<128xf32>
    %5 = vector.shape_cast %4 : vector<128xf32> to vector<1x128xf32>
    %6 = arith.mulf %3, %3 : vector<8x128xf32>
    %cst_5 = arith.constant dense<0.000000e+00> : vector<128xf32>
    %7 = vector.multi_reduction <add>, %6, %cst_5 [0] : vector<8x128xf32> to vector<128xf32>
    %8 = vector.shape_cast %7 : vector<128xf32> to vector<1x128xf32>
    %cst_6 = arith.constant 1.250000e-01 : f32
    %9 = vector.broadcast %cst_6 : f32 to vector<1x128xf32>
    %10 = arith.mulf %5, %9 : vector<1x128xf32>
    %cst_7 = arith.constant 1.250000e-01 : f32
    %11 = vector.broadcast %cst_7 : f32 to vector<1x128xf32>
    %12 = arith.mulf %8, %11 : vector<1x128xf32>
    %13 = arith.mulf %10, %10 : vector<1x128xf32>
    %14 = arith.subf %12, %13 : vector<1x128xf32>
    %cst_8 = arith.constant 0.000000e+00 : f32
    %15 = vector.broadcast %cst_8 : f32 to vector<1x128xf32>
    %16 = arith.maximumf %14, %15 : vector<1x128xf32>
    %c0_9 = arith.constant 0 : index
    %c0_10 = arith.constant 0 : index
    %17 = vector.load %arg2[%c0_9, %c0_10] : memref<14x128xf32, #tpu.memory_space<vmem>>, vector<1x128xf32>
    %cst_11 = arith.constant 9.99999974E-6 : f32
    %18 = vector.broadcast %cst_11 : f32 to vector<1x128xf32>
    %19 = arith.addf %16, %18 : vector<1x128xf32>
    %20 = math.rsqrt %19 : vector<1x128xf32>
    %21 = arith.mulf %17, %20 : vector<1x128xf32>
    %c1 = arith.constant 1 : index
    %c0_12 = arith.constant 0 : index
    %22 = vector.load %arg2[%c1, %c0_12] : memref<14x128xf32, #tpu.memory_space<vmem>>, vector<1x128xf32>
    %23 = arith.mulf %10, %21 : vector<1x128xf32>
    %24 = arith.subf %22, %23 : vector<1x128xf32>
    %25 = vector.broadcast %21 : vector<1x128xf32> to vector<8x128xf32>
    %26 = arith.mulf %3, %25 : vector<8x128xf32>
    %27 = vector.broadcast %24 : vector<1x128xf32> to vector<8x128xf32>
    %28 = arith.addf %26, %27 : vector<8x128xf32>
    %cst_13 = arith.constant 0.000000e+00 : f32
    %29 = vector.broadcast %cst_13 : f32 to vector<8x128xf32>
    %30 = arith.maximumf %28, %29 : vector<8x128xf32>
    %c1_14 = arith.constant 1 : index
    %c0_15 = arith.constant 0 : index
    %c0_16 = arith.constant 0 : index
    %31 = vector.load %arg1[%c1_14, %c0_15, %c0_16] : memref<8x128x128xf32, #tpu.memory_space<vmem>>, vector<1x128x128xf32>
    %32 = vector.shape_cast %31 : vector<1x128x128xf32> to vector<128x128xf32>
    %cst_17 = arith.constant dense<0.000000e+00> : vector<8x128xf32>
    %33 = tpu.matmul %30, %32, %cst_17 {dimension_numbers = #tpu.dot_dimension_numbers<[1], [0], [0], [1], [0, 0, 1, 1], [], []>} : vector<8x128xf32>, vector<128x128xf32>, vector<8x128xf32> -> vector<8x128xf32>
    %cst_18 = arith.constant dense<0.000000e+00> : vector<128xf32>
    %34 = vector.multi_reduction <add>, %33, %cst_18 [0] : vector<8x128xf32> to vector<128xf32>
    %35 = vector.shape_cast %34 : vector<128xf32> to vector<1x128xf32>
    %36 = arith.mulf %33, %33 : vector<8x128xf32>
    %cst_19 = arith.constant dense<0.000000e+00> : vector<128xf32>
    %37 = vector.multi_reduction <add>, %36, %cst_19 [0] : vector<8x128xf32> to vector<128xf32>
    %38 = vector.shape_cast %37 : vector<128xf32> to vector<1x128xf32>
    %cst_20 = arith.constant 1.250000e-01 : f32
    %39 = vector.broadcast %cst_20 : f32 to vector<1x128xf32>
    %40 = arith.mulf %35, %39 : vector<1x128xf32>
    %cst_21 = arith.constant 1.250000e-01 : f32
    %41 = vector.broadcast %cst_21 : f32 to vector<1x128xf32>
    %42 = arith.mulf %38, %41 : vector<1x128xf32>
    %43 = arith.mulf %40, %40 : vector<1x128xf32>
    %44 = arith.subf %42, %43 : vector<1x128xf32>
    %cst_22 = arith.constant 0.000000e+00 : f32
    %45 = vector.broadcast %cst_22 : f32 to vector<1x128xf32>
    %46 = arith.maximumf %44, %45 : vector<1x128xf32>
    %c2 = arith.constant 2 : index
    %c0_23 = arith.constant 0 : index
    %47 = vector.load %arg2[%c2, %c0_23] : memref<14x128xf32, #tpu.memory_space<vmem>>, vector<1x128xf32>
    %cst_24 = arith.constant 9.99999974E-6 : f32
    %48 = vector.broadcast %cst_24 : f32 to vector<1x128xf32>
    %49 = arith.addf %46, %48 : vector<1x128xf32>
    %50 = math.rsqrt %49 : vector<1x128xf32>
    %51 = arith.mulf %47, %50 : vector<1x128xf32>
    %c3 = arith.constant 3 : index
    %c0_25 = arith.constant 0 : index
    %52 = vector.load %arg2[%c3, %c0_25] : memref<14x128xf32, #tpu.memory_space<vmem>>, vector<1x128xf32>
    %53 = arith.mulf %40, %51 : vector<1x128xf32>
    %54 = arith.subf %52, %53 : vector<1x128xf32>
    %55 = vector.broadcast %51 : vector<1x128xf32> to vector<8x128xf32>
    %56 = arith.mulf %33, %55 : vector<8x128xf32>
    %57 = vector.broadcast %54 : vector<1x128xf32> to vector<8x128xf32>
    %58 = arith.addf %56, %57 : vector<8x128xf32>
    %cst_26 = arith.constant 0.000000e+00 : f32
    %59 = vector.broadcast %cst_26 : f32 to vector<8x128xf32>
    %60 = arith.maximumf %58, %59 : vector<8x128xf32>
    %c2_27 = arith.constant 2 : index
    %c0_28 = arith.constant 0 : index
    %c0_29 = arith.constant 0 : index
    %61 = vector.load %arg1[%c2_27, %c0_28, %c0_29] : memref<8x128x128xf32, #tpu.memory_space<vmem>>, vector<1x128x128xf32>
    %62 = vector.shape_cast %61 : vector<1x128x128xf32> to vector<128x128xf32>
    %cst_30 = arith.constant dense<0.000000e+00> : vector<8x128xf32>
    %63 = tpu.matmul %60, %62, %cst_30 {dimension_numbers = #tpu.dot_dimension_numbers<[1], [0], [0], [1], [0, 0, 1, 1], [], []>} : vector<8x128xf32>, vector<128x128xf32>, vector<8x128xf32> -> vector<8x128xf32>
    %cst_31 = arith.constant dense<0.000000e+00> : vector<128xf32>
    %64 = vector.multi_reduction <add>, %63, %cst_31 [0] : vector<8x128xf32> to vector<128xf32>
    %65 = vector.shape_cast %64 : vector<128xf32> to vector<1x128xf32>
    %66 = arith.mulf %63, %63 : vector<8x128xf32>
    %cst_32 = arith.constant dense<0.000000e+00> : vector<128xf32>
    %67 = vector.multi_reduction <add>, %66, %cst_32 [0] : vector<8x128xf32> to vector<128xf32>
    %68 = vector.shape_cast %67 : vector<128xf32> to vector<1x128xf32>
    %cst_33 = arith.constant 1.250000e-01 : f32
    %69 = vector.broadcast %cst_33 : f32 to vector<1x128xf32>
    %70 = arith.mulf %65, %69 : vector<1x128xf32>
    %cst_34 = arith.constant 1.250000e-01 : f32
    %71 = vector.broadcast %cst_34 : f32 to vector<1x128xf32>
    %72 = arith.mulf %68, %71 : vector<1x128xf32>
    %73 = arith.mulf %70, %70 : vector<1x128xf32>
    %74 = arith.subf %72, %73 : vector<1x128xf32>
    %cst_35 = arith.constant 0.000000e+00 : f32
    %75 = vector.broadcast %cst_35 : f32 to vector<1x128xf32>
    %76 = arith.maximumf %74, %75 : vector<1x128xf32>
    %c4 = arith.constant 4 : index
    %c0_36 = arith.constant 0 : index
    %77 = vector.load %arg2[%c4, %c0_36] : memref<14x128xf32, #tpu.memory_space<vmem>>, vector<1x128xf32>
    %cst_37 = arith.constant 9.99999974E-6 : f32
    %78 = vector.broadcast %cst_37 : f32 to vector<1x128xf32>
    %79 = arith.addf %76, %78 : vector<1x128xf32>
    %80 = math.rsqrt %79 : vector<1x128xf32>
    %81 = arith.mulf %77, %80 : vector<1x128xf32>
    %c5 = arith.constant 5 : index
    %c0_38 = arith.constant 0 : index
    %82 = vector.load %arg2[%c5, %c0_38] : memref<14x128xf32, #tpu.memory_space<vmem>>, vector<1x128xf32>
    %83 = arith.mulf %70, %81 : vector<1x128xf32>
    %84 = arith.subf %82, %83 : vector<1x128xf32>
    %85 = vector.broadcast %81 : vector<1x128xf32> to vector<8x128xf32>
    %86 = arith.mulf %63, %85 : vector<8x128xf32>
    %87 = vector.broadcast %84 : vector<1x128xf32> to vector<8x128xf32>
    %88 = arith.addf %86, %87 : vector<8x128xf32>
    %cst_39 = arith.constant 0.000000e+00 : f32
    %89 = vector.broadcast %cst_39 : f32 to vector<8x128xf32>
    %90 = arith.maximumf %88, %89 : vector<8x128xf32>
    %c3_40 = arith.constant 3 : index
    %c0_41 = arith.constant 0 : index
    %c0_42 = arith.constant 0 : index
    %91 = vector.load %arg1[%c3_40, %c0_41, %c0_42] : memref<8x128x128xf32, #tpu.memory_space<vmem>>, vector<1x128x128xf32>
    %92 = vector.shape_cast %91 : vector<1x128x128xf32> to vector<128x128xf32>
    %cst_43 = arith.constant dense<0.000000e+00> : vector<8x128xf32>
    %93 = tpu.matmul %90, %92, %cst_43 {dimension_numbers = #tpu.dot_dimension_numbers<[1], [0], [0], [1], [0, 0, 1, 1], [], []>} : vector<8x128xf32>, vector<128x128xf32>, vector<8x128xf32> -> vector<8x128xf32>
    %c6 = arith.constant 6 : index
    %c0_44 = arith.constant 0 : index
    %94 = vector.load %arg2[%c6, %c0_44] : memref<14x128xf32, #tpu.memory_space<vmem>>, vector<1x128xf32>
    %95 = vector.broadcast %94 : vector<1x128xf32> to vector<8x128xf32>
    %96 = arith.addf %93, %95 : vector<8x128xf32>
    %c0_45 = arith.constant 0 : index
    %c0_46 = arith.constant 0 : index
    %97 = vector.load %arg4[%c0_45, %c0_46] : memref<8x128xf32, #tpu.memory_space<vmem>>, vector<8x128xf32>
    tpu.vector_store %arg4[%c0_45, %c0_46], %96 {strides = array<i32>} : memref<8x128xf32, #tpu.memory_space<vmem>>, vector<8x128xf32>,
    %c4_47 = arith.constant 4 : index
    %c0_48 = arith.constant 0 : index
    %c0_49 = arith.constant 0 : index
    %98 = vector.load %arg1[%c4_47, %c0_48, %c0_49] : memref<8x128x128xf32, #tpu.memory_space<vmem>>, vector<1x128x128xf32>
    %99 = vector.shape_cast %98 : vector<1x128x128xf32> to vector<128x128xf32>
    %cst_50 = arith.constant dense<0.000000e+00> : vector<8x128xf32>
    %100 = tpu.matmul %96, %99, %cst_50 {dimension_numbers = #tpu.dot_dimension_numbers<[1], [0], [0], [1], [0, 0, 1, 1], [], []>} : vector<8x128xf32>, vector<128x128xf32>, vector<8x128xf32> -> vector<8x128xf32>
    %cst_51 = arith.constant dense<0.000000e+00> : vector<128xf32>
    %101 = vector.multi_reduction <add>, %100, %cst_51 [0] : vector<8x128xf32> to vector<128xf32>
    %102 = vector.shape_cast %101 : vector<128xf32> to vector<1x128xf32>
    %103 = arith.mulf %100, %100 : vector<8x128xf32>
    %cst_52 = arith.constant dense<0.000000e+00> : vector<128xf32>
    %104 = vector.multi_reduction <add>, %103, %cst_52 [0] : vector<8x128xf32> to vector<128xf32>
    %105 = vector.shape_cast %104 : vector<128xf32> to vector<1x128xf32>
    %cst_53 = arith.constant 1.250000e-01 : f32
    %106 = vector.broadcast %cst_53 : f32 to vector<1x128xf32>
    %107 = arith.mulf %102, %106 : vector<1x128xf32>
    %cst_54 = arith.constant 1.250000e-01 : f32
    %108 = vector.broadcast %cst_54 : f32 to vector<1x128xf32>
    %109 = arith.mulf %105, %108 : vector<1x128xf32>
    %110 = arith.mulf %107, %107 : vector<1x128xf32>
    %111 = arith.subf %109, %110 : vector<1x128xf32>
    %cst_55 = arith.constant 0.000000e+00 : f32
    %112 = vector.broadcast %cst_55 : f32 to vector<1x128xf32>
    %113 = arith.maximumf %111, %112 : vector<1x128xf32>
    %c7 = arith.constant 7 : index
    %c0_56 = arith.constant 0 : index
    %114 = vector.load %arg2[%c7, %c0_56] : memref<14x128xf32, #tpu.memory_space<vmem>>, vector<1x128xf32>
    %cst_57 = arith.constant 9.99999974E-6 : f32
    %115 = vector.broadcast %cst_57 : f32 to vector<1x128xf32>
    %116 = arith.addf %113, %115 : vector<1x128xf32>
    %117 = math.rsqrt %116 : vector<1x128xf32>
    %118 = arith.mulf %114, %117 : vector<1x128xf32>
    %c8 = arith.constant 8 : index
    %c0_58 = arith.constant 0 : index
    %119 = vector.load %arg2[%c8, %c0_58] : memref<14x128xf32, #tpu.memory_space<vmem>>, vector<1x128xf32>
    %120 = arith.mulf %107, %118 : vector<1x128xf32>
    %121 = arith.subf %119, %120 : vector<1x128xf32>
    %122 = vector.broadcast %118 : vector<1x128xf32> to vector<8x128xf32>
    %123 = arith.mulf %100, %122 : vector<8x128xf32>
    %124 = vector.broadcast %121 : vector<1x128xf32> to vector<8x128xf32>
    %125 = arith.addf %123, %124 : vector<8x128xf32>
    %cst_59 = arith.constant 0.000000e+00 : f32
    %126 = vector.broadcast %cst_59 : f32 to vector<8x128xf32>
    %127 = arith.maximumf %125, %126 : vector<8x128xf32>
    %c5_60 = arith.constant 5 : index
    %c0_61 = arith.constant 0 : index
    %c0_62 = arith.constant 0 : index
    %128 = vector.load %arg1[%c5_60, %c0_61, %c0_62] : memref<8x128x128xf32, #tpu.memory_space<vmem>>, vector<1x128x128xf32>
    %129 = vector.shape_cast %128 : vector<1x128x128xf32> to vector<128x128xf32>
    %cst_63 = arith.constant dense<0.000000e+00> : vector<8x128xf32>
    %130 = tpu.matmul %127, %129, %cst_63 {dimension_numbers = #tpu.dot_dimension_numbers<[1], [0], [0], [1], [0, 0, 1, 1], [], []>} : vector<8x128xf32>, vector<128x128xf32>, vector<8x128xf32> -> vector<8x128xf32>
    %cst_64 = arith.constant dense<0.000000e+00> : vector<128xf32>
    %131 = vector.multi_reduction <add>, %130, %cst_64 [0] : vector<8x128xf32> to vector<128xf32>
    %132 = vector.shape_cast %131 : vector<128xf32> to vector<1x128xf32>
    %133 = arith.mulf %130, %130 : vector<8x128xf32>
    %cst_65 = arith.constant dense<0.000000e+00> : vector<128xf32>
    %134 = vector.multi_reduction <add>, %133, %cst_65 [0] : vector<8x128xf32> to vector<128xf32>
    %135 = vector.shape_cast %134 : vector<128xf32> to vector<1x128xf32>
    %cst_66 = arith.constant 1.250000e-01 : f32
    %136 = vector.broadcast %cst_66 : f32 to vector<1x128xf32>
    %137 = arith.mulf %132, %136 : vector<1x128xf32>
    %cst_67 = arith.constant 1.250000e-01 : f32
    %138 = vector.broadcast %cst_67 : f32 to vector<1x128xf32>
    %139 = arith.mulf %135, %138 : vector<1x128xf32>
    %140 = arith.mulf %137, %137 : vector<1x128xf32>
    %141 = arith.subf %139, %140 : vector<1x128xf32>
    %cst_68 = arith.constant 0.000000e+00 : f32
    %142 = vector.broadcast %cst_68 : f32 to vector<1x128xf32>
    %143 = arith.maximumf %141, %142 : vector<1x128xf32>
    %c9 = arith.constant 9 : index
    %c0_69 = arith.constant 0 : index
    %144 = vector.load %arg2[%c9, %c0_69] : memref<14x128xf32, #tpu.memory_space<vmem>>, vector<1x128xf32>
    %cst_70 = arith.constant 9.99999974E-6 : f32
    %145 = vector.broadcast %cst_70 : f32 to vector<1x128xf32>
    %146 = arith.addf %143, %145 : vector<1x128xf32>
    %147 = math.rsqrt %146 : vector<1x128xf32>
    %148 = arith.mulf %144, %147 : vector<1x128xf32>
    %c10 = arith.constant 10 : index
    %c0_71 = arith.constant 0 : index
    %149 = vector.load %arg2[%c10, %c0_71] : memref<14x128xf32, #tpu.memory_space<vmem>>, vector<1x128xf32>
    %150 = arith.mulf %137, %148 : vector<1x128xf32>
    %151 = arith.subf %149, %150 : vector<1x128xf32>
    %152 = vector.broadcast %148 : vector<1x128xf32> to vector<8x128xf32>
    %153 = arith.mulf %130, %152 : vector<8x128xf32>
    %154 = vector.broadcast %151 : vector<1x128xf32> to vector<8x128xf32>
    %155 = arith.addf %153, %154 : vector<8x128xf32>
    %cst_72 = arith.constant 0.000000e+00 : f32
    %156 = vector.broadcast %cst_72 : f32 to vector<8x128xf32>
    %157 = arith.maximumf %155, %156 : vector<8x128xf32>
    %c6_73 = arith.constant 6 : index
    %c0_74 = arith.constant 0 : index
    %c0_75 = arith.constant 0 : index
    %158 = vector.load %arg1[%c6_73, %c0_74, %c0_75] : memref<8x128x128xf32, #tpu.memory_space<vmem>>, vector<1x128x128xf32>
    %159 = vector.shape_cast %158 : vector<1x128x128xf32> to vector<128x128xf32>
    %cst_76 = arith.constant dense<0.000000e+00> : vector<8x128xf32>
    %160 = tpu.matmul %157, %159, %cst_76 {dimension_numbers = #tpu.dot_dimension_numbers<[1], [0], [0], [1], [0, 0, 1, 1], [], []>} : vector<8x128xf32>, vector<128x128xf32>, vector<8x128xf32> -> vector<8x128xf32>
    %cst_77 = arith.constant dense<0.000000e+00> : vector<128xf32>
    %161 = vector.multi_reduction <add>, %160, %cst_77 [0] : vector<8x128xf32> to vector<128xf32>
    %162 = vector.shape_cast %161 : vector<128xf32> to vector<1x128xf32>
    %163 = arith.mulf %160, %160 : vector<8x128xf32>
    %cst_78 = arith.constant dense<0.000000e+00> : vector<128xf32>
    %164 = vector.multi_reduction <add>, %163, %cst_78 [0] : vector<8x128xf32> to vector<128xf32>
    %165 = vector.shape_cast %164 : vector<128xf32> to vector<1x128xf32>
    %cst_79 = arith.constant 1.250000e-01 : f32
    %166 = vector.broadcast %cst_79 : f32 to vector<1x128xf32>
    %167 = arith.mulf %162, %166 : vector<1x128xf32>
    %cst_80 = arith.constant 1.250000e-01 : f32
    %168 = vector.broadcast %cst_80 : f32 to vector<1x128xf32>
    %169 = arith.mulf %165, %168 : vector<1x128xf32>
    %170 = arith.mulf %167, %167 : vector<1x128xf32>
    %171 = arith.subf %169, %170 : vector<1x128xf32>
    %cst_81 = arith.constant 0.000000e+00 : f32
    %172 = vector.broadcast %cst_81 : f32 to vector<1x128xf32>
    %173 = arith.maximumf %171, %172 : vector<1x128xf32>
    %c11 = arith.constant 11 : index
    %c0_82 = arith.constant 0 : index
    %174 = vector.load %arg2[%c11, %c0_82] : memref<14x128xf32, #tpu.memory_space<vmem>>, vector<1x128xf32>
    %cst_83 = arith.constant 9.99999974E-6 : f32
    %175 = vector.broadcast %cst_83 : f32 to vector<1x128xf32>
    %176 = arith.addf %173, %175 : vector<1x128xf32>
    %177 = math.rsqrt %176 : vector<1x128xf32>
    %178 = arith.mulf %174, %177 : vector<1x128xf32>
    %c12 = arith.constant 12 : index
    %c0_84 = arith.constant 0 : index
    %179 = vector.load %arg2[%c12, %c0_84] : memref<14x128xf32, #tpu.memory_space<vmem>>, vector<1x128xf32>
    %180 = arith.mulf %167, %178 : vector<1x128xf32>
    %181 = arith.subf %179, %180 : vector<1x128xf32>
    %182 = vector.broadcast %178 : vector<1x128xf32> to vector<8x128xf32>
    %183 = arith.mulf %160, %182 : vector<8x128xf32>
    %184 = vector.broadcast %181 : vector<1x128xf32> to vector<8x128xf32>
    %185 = arith.addf %183, %184 : vector<8x128xf32>
    %cst_85 = arith.constant 0.000000e+00 : f32
    %186 = vector.broadcast %cst_85 : f32 to vector<8x128xf32>
    %187 = arith.maximumf %185, %186 : vector<8x128xf32>
    %c7_86 = arith.constant 7 : index
    %c0_87 = arith.constant 0 : index
    %c0_88 = arith.constant 0 : index
    %188 = vector.load %arg1[%c7_86, %c0_87, %c0_88] : memref<8x128x128xf32, #tpu.memory_space<vmem>>, vector<1x128x128xf32>
    %189 = vector.shape_cast %188 : vector<1x128x128xf32> to vector<128x128xf32>
    %cst_89 = arith.constant dense<0.000000e+00> : vector<8x128xf32>
    %190 = tpu.matmul %187, %189, %cst_89 {dimension_numbers = #tpu.dot_dimension_numbers<[1], [0], [0], [1], [0, 0, 1, 1], [], []>} : vector<8x128xf32>, vector<128x128xf32>, vector<8x128xf32> -> vector<8x128xf32>
    %c13 = arith.constant 13 : index
    %c0_90 = arith.constant 0 : index
    %191 = vector.load %arg2[%c13, %c0_90] : memref<14x128xf32, #tpu.memory_space<vmem>>, vector<1x128xf32>
    %192 = vector.broadcast %191 : vector<1x128xf32> to vector<8x128xf32>
    %193 = arith.addf %190, %192 : vector<8x128xf32>
    %c0_91 = arith.constant 0 : index
    %c0_92 = arith.constant 0 : index
    %194 = vector.load %arg3[%c0_91, %c0_92] : memref<8x128xf32, #tpu.memory_space<vmem>>, vector<8x128xf32>
    tpu.vector_store %arg3[%c0_91, %c0_92], %193 {strides = array<i32>} : memref<8x128xf32, #tpu.memory_space<vmem>>, vector<8x128xf32>,
    return
  }
}

</mosaic_0001>

<llo_original>
// kernel: ae_forward_padded.1
$region0: #{ae_forward_padded.1}
  #allocation0 [shape = 'u32[]', space=smem, size = 0x4, offset = 0x4, fixed_abs, tag = 'smem constant byte address 0x4 - core index']
  #allocation1 [shape = 'u32[144,128]{1,0:T(1,128)}', space=vmem, size = 0x12000, scoped, tag = 'internal scratch']
  %s0 = inlined_call_operand.vmem [shape: f32[8,128], index: 0, kind: input, shape index: {}]
  %s1 = inlined_call_operand.hbm [shape: f32[8,128,128], index: 1, kind: input, shape index: {}]
  %s2 = inlined_call_operand.vmem [shape: f32[14,128], index: 2, kind: input, shape index: {}]
  %s3 = inlined_call_operand.hbm [shape: f32[8,128], index: 3, kind: output, shape index: {0}]
  %s4 = inlined_call_operand.hbm [shape: f32[8,128], index: 4, kind: output, shape index: {1}]
  %5 = xla_tuple %s3, %s4
  %s6 = sld [smem:[#allocation0]]
  $region34: #{ae_forward_padded.1} parent=0
    _
  %s8 = ssub.s32 1, %s6
  %s9 = scalar_select 0, %s8, %s6
  $region1: #{ae_forward_padded.1} parent=0
    #allocation2 [shape = 'u8[524288]{0}', space=vmem, size = 0x80000, scoped, tag = 'input window, operand 1, single buffered']
    #allocation3 [shape = 's32[1]{0}', space=sflag, size = 0x4, scoped, tag = 'scoped memory for ae_forward_padded.1']
    #allocation4 [shape = 's32[1]{0}', space=sflag, size = 0x4, scoped, tag = 'scoped memory for ae_forward_padded.1']
    #allocation5 [shape = 'u8[4096]{0}', space=vmem, size = 0x1000, scoped, tag = 'output window, operand 0, single buffered']
    #allocation6 [shape = 'u8[4096]{0}', space=vmem, size = 0x1000, scoped, tag = 'output window, operand 1, single buffered']
    #allocation7 [shape = 's32[1]{0}', space=sflag, size = 0x4, scoped, tag = 'scoped memory for ae_forward_padded.1']
    %10 = vsyncpa [#allocation3], 0
    %11 = vsyncpa [#allocation4], 0
    %12 = vsyncpa [#allocation7], 0
    // Predicated region
    $region2: #{ae_forward_padded.1} parent=1 // pred_check
      _
    $region3: #{ae_forward_padded.1} parent=1 // pred_check_branch
      %14 = sbr.rel (0) target = $region5
    $region4: #{ae_forward_padded.1} parent=1 // pred_region
      _
    $region5: #{ae_forward_padded.1} parent=1 // pred_fallthru
      _
    // Predicated region
    $region6: #{ae_forward_padded.1} parent=1 // pred_check
      _
    $region7: #{ae_forward_padded.1} parent=1 // pred_check_branch
      %16 = sbr.rel (0) target = $region9
    $region8: #{ae_forward_padded.1} parent=1 // pred_region
      %s18 = ssub.s32 16384, 16384
      %19 = vsyncadd [#allocation3], %s18
      %s20 = sshll.u32 [#allocation2], 4
      %s21 = int_to_ptr.vmem [resolvable:$true] %s20
      %26 = dma.hbm_to_vmem [thread:$0]  %s1, 16384, %s21, [#allocation3], 128, 128, 8
    $region9: #{ae_forward_padded.1} parent=1 // pred_fallthru
      _
    // Predicated region
    $region10: #{ae_forward_padded.1} parent=1 // pred_check
      _
    $region11: #{ae_forward_padded.1} parent=1 // pred_check_branch
      %28 = sbr.rel (0) target = $region13
    $region12: #{ae_forward_padded.1} parent=1 // pred_region
      _
    $region13: #{ae_forward_padded.1} parent=1 // pred_fallthru
      _
    // Predicated region
    $region14: #{ae_forward_padded.1} parent=1 // pred_check
      _
    $region15: #{ae_forward_padded.1} parent=1 // pred_check_branch
      %30 = sbr.rel (0) target = $region17
    $region16: #{ae_forward_padded.1} parent=1 // pred_region
      %31 = dma.done [#allocation3], 16384
    $region17: #{ae_forward_padded.1} parent=1 // pred_fallthru
      _
    %v32 = vld [vmem:[%s0] sm:$0xff]
    %v33 = vld [vmem:[#allocation2] sm:$0xff]
    %v34 = vld [vmem:[#allocation2 + $0x8] sm:$0xff]
    %v35 = vld [vmem:[#allocation2 + $0x10] sm:$0xff]
    %v36 = vld [vmem:[#allocation2 + $0x18] sm:$0xff]
    %v37 = vld [vmem:[#allocation2 + $0x20] sm:$0xff]
    %v38 = vld [vmem:[#allocation2 + $0x28] sm:$0xff]
    %v39 = vld [vmem:[#allocation2 + $0x30] sm:$0xff]
    %v40 = vld [vmem:[#allocation2 + $0x38] sm:$0xff]
    %v41 = vld [vmem:[#allocation2 + $0x40] sm:$0xff]
    %v42 = vld [vmem:[#allocation2 + $0x48] sm:$0xff]
    %v43 = vld [vmem:[#allocation2 + $0x50] sm:$0xff]
    %v44 = vld [vmem:[#allocation2 + $0x58] sm:$0xff]
    %v45 = vld [vmem:[#allocation2 + $0x60] sm:$0xff]
    %v46 = vld [vmem:[#allocation2 + $0x68] sm:$0xff]
    %v47 = vld [vmem:[#allocation2 + $0x70] sm:$0xff]
    %v48 = vld [vmem:[#allocation2 + $0x78] sm:$0xff]
    %49 = vmatprep.subr.mxu0 0.0
    %50 = vmatpush1.msra.mxu0 %v33
    %51 = vmatprep.subr.mxu0 0.0
    %52 = vmatpush1.msra.mxu0 %v34
    %53 = vmatprep.subr.mxu0 0.0
    %54 = vmatpush1.msra.mxu0 %v35
    %55 = vmatprep.subr.mxu0 0.0
    %56 = vmatpush1.msra.mxu0 %v36
    %57 = vmatprep.subr.mxu0 0.0
    %58 = vmatpush1.msra.mxu0 %v37
    %59 = vmatprep.subr.mxu0 0.0
    %60 = vmatpush1.msra.mxu0 %v38
    %61 = vmatprep.subr.mxu0 0.0
    %62 = vmatpush1.msra.mxu0 %v39
    %63 = vmatprep.subr.mxu0 0.0
    %64 = vmatpush1.msra.mxu0 %v40
    %65 = vmatprep.subr.mxu0 0.0
    %66 = vmatpush1.msra.mxu0 %v41
    %67 = vmatprep.subr.mxu0 0.0
    %68 = vmatpush1.msra.mxu0 %v42
    %69 = vmatprep.subr.mxu0 0.0
    %70 = vmatpush1.msra.mxu0 %v43
    %71 = vmatprep.subr.mxu0 0.0
    %72 = vmatpush1.msra.mxu0 %v44
    %73 = vmatprep.subr.mxu0 0.0
    %74 = vmatpush1.msra.mxu0 %v45
    %75 = vmatprep.subr.mxu0 0.0
    %76 = vmatpush1.msra.mxu0 %v46
    %77 = vmatprep.subr.mxu0 0.0
    %78 = vmatpush1.msra.mxu0 %v47
    %79 = vmatprep.subr.mxu0 0.0
    %80 = vmatpush1.msra.mxu0 %v48
    %81 = vmatprep.subr.mxu0 0.0
    %82 = vmatpush1.msra.mxu0 0.0
    %83 = vmatprep.subr.mxu0 0.0
    %84 = vmatpush1.msra.mxu0 0.0
    %85 = vmatprep.subr.mxu0 0.0
    %86 = vmatpush1.msra.mxu0 0.0
    %87 = vmatprep.subr.mxu0 0.0
    %88 = vmatpush1.msra.mxu0 0.0
    %89 = vmatprep.subr.mxu0 0.0
    %90 = vmatpush1.msra.mxu0 0.0
    %91 = vmatprep.subr.mxu0 0.0
    %92 = vmatpush1.msra.mxu0 0.0
    %93 = vmatprep.subr.mxu0 0.0
    %94 = vmatpush1.msra.mxu0 0.0
    %95 = vmatprep.subr.mxu0 0.0
    %96 = vmatpush1.msra.mxu0 0.0
    %97 = vmatprep.subr.mxu0 0.0
    %98 = vmatpush1.msra.mxu0 0.0
    %99 = vmatprep.subr.mxu0 0.0
    %100 = vmatpush1.msra.mxu0 0.0
    %101 = vmatprep.subr.mxu0 0.0
    %102 = vmatpush1.msra.mxu0 0.0
    %103 = vmatprep.subr.mxu0 0.0
    %104 = vmatpush1.msra.mxu0 0.0
    %105 = vmatprep.subr.mxu0 0.0
    %106 = vmatpush1.msra.mxu0 0.0
    %107 = vmatprep.subr.mxu0 0.0
    %108 = vmatpush1.msra.mxu0 0.0
    %109 = vmatprep.subr.mxu0 0.0
    %110 = vmatpush1.msra.mxu0 0.0
    %111 = vmatprep.subr.mxu0 0.0
    %112 = vmatpush1.msra.mxu0 0.0
    %113 = vmatprep.mubr.f32.mxu0 0.0
    %114 = vmatmul.mubr.f32.gmra.mrb[0].mxu0 %v32
    %v115 = vpop.f32.mrb[0].mxu0
    %v116 = vadd.f32 0.0, %v115
    %v117 = vpop.f32.mrb[0].mxu0
    %118 = vdwg.mxu0
    %v119 = vrot.slane %v116, 4
    %v120 = vadd.f32 %v116, %v119
    %v121 = vrot.slane %v120, 2
    %v122 = vadd.f32 %v120, %v121
    %v123 = vrot.slane %v122, 1
    %v124 = vadd.f32 %v122, %v123
    %v125 = vmul.f32 %v116, %v116
    %v126 = vrot.slane %v125, 4
    %v127 = vadd.f32 %v125, %v126
    %v128 = vrot.slane %v127, 2
    %v129 = vadd.f32 %v127, %v128
    %v130 = vrot.slane %v129, 1
    %v131 = vadd.f32 %v129, %v130
    %v132 = vmul.f32 %v124, 0.125
    %v133 = vmul.f32 %v131, 0.125
    %v134 = vmul.f32 %v132, %v132
    %v135 = vsub.f32 %v133, %v134
    %v136 = vmax.f32 %v135, 0.0
    %v137 = vld [vmem:[%s2] sm:$0x1]
    %v138 = vadd.f32 %v136, 1e-05
    %v139 = vrsqrt.pop %v138
    %v140 = vmul.f32 %v137, %v139
    %v141 = vld [vmem:[%s2 + $0x1] sm:$0x1]
    %v142 = vmul.f32 %v132, %v140
    %v143 = vsub.f32 %v141, %v142
    %v144 = vlaneseq
    %v145 = vshrl.u32 %v144, 7
    %v146 = vsub.s32 0, %v145
    %v147 = vrot.slane %v140, %v146
    %v148 = vmul.f32 %v116, %v147
    %v149 = vlaneseq
    %v150 = vshrl.u32 %v149, 7
    %v151 = vsub.s32 0, %v150
    %v152 = vrot.slane %v143, %v151
    %v153 = vadd.f32 %v148, %v152
    %v154 = vmax.f32 %v153, 0.0
    %s155 = scalar_lea.vmem [#allocation2], 128
    %v156 = vld [vmem:[%s155] sm:$0xff]
    %v157 = vld [vmem:[%s155 + $0x8] sm:$0xff]
    %v158 = vld [vmem:[%s155 + $0x10] sm:$0xff]
    %v159 = vld [vmem:[%s155 + $0x18] sm:$0xff]
    %v160 = vld [vmem:[%s155 + $0x20] sm:$0xff]
    %v161 = vld [vmem:[%s155 + $0x28] sm:$0xff]
    %v162 = vld [vmem:[%s155 + $0x30] sm:$0xff]
    %v163 = vld [vmem:[%s155 + $0x38] sm:$0xff]
    %v164 = vld [vmem:[%s155 + $0x40] sm:$0xff]
    %v165 = vld [vmem:[%s155 + $0x48] sm:$0xff]
    %v166 = vld [vmem:[%s155 + $0x50] sm:$0xff]
    %v167 = vld [vmem:[%s155 + $0x58] sm:$0xff]
    %v168 = vld [vmem:[%s155 + $0x60] sm:$0xff]
    %v169 = vld [vmem:[%s155 + $0x68] sm:$0xff]
    %v170 = vld [vmem:[%s155 + $0x70] sm:$0xff]
    %v171 = vld [vmem:[%s155 + $0x78] sm:$0xff]
    %172 = vmatprep.subr.mxu0 0.0
    %173 = vmatpush1.msra.mxu0 %v156
    %174 = vmatprep.subr.mxu0 0.0
    %175 = vmatpush1.msra.mxu0 %v157
    %176 = vmatprep.subr.mxu0 0.0
    %177 = vmatpush1.msra.mxu0 %v158
    %178 = vmatprep.subr.mxu0 0.0
    %179 = vmatpush1.msra.mxu0 %v159
    %180 = vmatprep.subr.mxu0 0.0
    %181 = vmatpush1.msra.mxu0 %v160
    %182 = vmatprep.subr.mxu0 0.0
    %183 = vmatpush1.msra.mxu0 %v161
    %184 = vmatprep.subr.mxu0 0.0
    %185 = vmatpush1.msra.mxu0 %v162
    %186 = vmatprep.subr.mxu0 0.0
    %187 = vmatpush1.msra.mxu0 %v163
    %188 = vmatprep.subr.mxu0 0.0
    %189 = vmatpush1.msra.mxu0 %v164
    %190 = vmatprep.subr.mxu0 0.0
    %191 = vmatpush1.msra.mxu0 %v165
    %192 = vmatprep.subr.mxu0 0.0
    %193 = vmatpush1.msra.mxu0 %v166
    %194 = vmatprep.subr.mxu0 0.0
    %195 = vmatpush1.msra.mxu0 %v167
    %196 = vmatprep.subr.mxu0 0.0
    %197 = vmatpush1.msra.mxu0 %v168
    %198 = vmatprep.subr.mxu0 0.0
    %199 = vmatpush1.msra.mxu0 %v169
    %200 = vmatprep.subr.mxu0 0.0
    %201 = vmatpush1.msra.mxu0 %v170
    %202 = vmatprep.subr.mxu0 0.0
    %203 = vmatpush1.msra.mxu0 %v171
    %204 = vmatprep.subr.mxu0 0.0
    %205 = vmatpush1.msra.mxu0 0.0
    %206 = vmatprep.subr.mxu0 0.0
    %207 = vmatpush1.msra.mxu0 0.0
    %208 = vmatprep.subr.mxu0 0.0
    %209 = vmatpush1.msra.mxu0 0.0
    %210 = vmatprep.subr.mxu0 0.0
    %211 = vmatpush1.msra.mxu0 0.0
    %212 = vmatprep.subr.mxu0 0.0
    %213 = vmatpush1.msra.mxu0 0.0
    %214 = vmatprep.subr.mxu0 0.0
    %215 = vmatpush1.msra.mxu0 0.0
    %216 = vmatprep.subr.mxu0 0.0
    %217 = vmatpush1.msra.mxu0 0.0
    %218 = vmatprep.subr.mxu0 0.0
    %219 = vmatpush1.msra.mxu0 0.0
    %220 = vmatprep.subr.mxu0 0.0
    %221 = vmatpush1.msra.mxu0 0.0
    %222 = vmatprep.subr.mxu0 0.0
    %223 = vmatpush1.msra.mxu0 0.0
    %224 = vmatprep.subr.mxu0 0.0
    %225 = vmatpush1.msra.mxu0 0.0
    %226 = vmatprep.subr.mxu0 0.0
    %227 = vmatpush1.msra.mxu0 0.0
    %228 = vmatprep.subr.mxu0 0.0
    %229 = vmatpush1.msra.mxu0 0.0
    %230 = vmatprep.subr.mxu0 0.0
    %231 = vmatpush1.msra.mxu0 0.0
    %232 = vmatprep.subr.mxu0 0.0
    %233 = vmatpush1.msra.mxu0 0.0
    %234 = vmatprep.subr.mxu0 0.0
    %235 = vmatpush1.msra.mxu0 0.0
    %236 = vmatprep.mubr.f32.mxu0 0.0
    %237 = vmatmul.mubr.f32.gmra.mrb[0].mxu0 %v154
    %v238 = vpop.f32.mrb[0].mxu0
    %v239 = vadd.f32 0.0, %v238
    %v240 = vpop.f32.mrb[0].mxu0
    %241 = vdwg.mxu0
    %v242 = vrot.slane %v239, 4
    %v243 = vadd.f32 %v239, %v242
    %v244 = vrot.slane %v243, 2
    %v245 = vadd.f32 %v243, %v244
    %v246 = vrot.slane %v245, 1
    %v247 = vadd.f32 %v245, %v246
    %v248 = vmul.f32 %v239, %v239
    %v249 = vrot.slane %v248, 4
    %v250 = vadd.f32 %v248, %v249
    %v251 = vrot.slane %v250, 2
    %v252 = vadd.f32 %v250, %v251
    %v253 = vrot.slane %v252, 1
    %v254 = vadd.f32 %v252, %v253
    %v255 = vmul.f32 %v247, 0.125
    %v256 = vmul.f32 %v254, 0.125
    %v257 = vmul.f32 %v255, %v255
    %v258 = vsub.f32 %v256, %v257
    %v259 = vmax.f32 %v258, 0.0
    %v260 = vld [vmem:[%s2 + $0x2] sm:$0x1]
    %v261 = vadd.f32 %v259, 1e-05
    %v262 = vrsqrt.pop %v261
    %v263 = vmul.f32 %v260, %v262
    %v264 = vld [vmem:[%s2 + $0x3] sm:$0x1]
    %v265 = vmul.f32 %v255, %v263
    %v266 = vsub.f32 %v264, %v265
    %v267 = vlaneseq
    %v268 = vshrl.u32 %v267, 7
    %v269 = vsub.s32 0, %v268
    %v270 = vrot.slane %v263, %v269
    %v271 = vmul.f32 %v239, %v270
    %v272 = vlaneseq
    %v273 = vshrl.u32 %v272, 7
    %v274 = vsub.s32 0, %v273
    %v275 = vrot.slane %v266, %v274
    %v276 = vadd.f32 %v271, %v275
    %v277 = vmax.f32 %v276, 0.0
    %s278 = scalar_lea.vmem [#allocation2], 256
    %v279 = vld [vmem:[%s278] sm:$0xff]
    %v280 = vld [vmem:[%s278 + $0x8] sm:$0xff]
    %v281 = vld [vmem:[%s278 + $0x10] sm:$0xff]
    %v282 = vld [vmem:[%s278 + $0x18] sm:$0xff]
    %v283 = vld [vmem:[%s278 + $0x20] sm:$0xff]
    %v284 = vld [vmem:[%s278 + $0x28] sm:$0xff]
    %v285 = vld [vmem:[%s278 + $0x30] sm:$0xff]
    %v286 = vld [vmem:[%s278 + $0x38] sm:$0xff]
    %v287 = vld [vmem:[%s278 + $0x40] sm:$0xff]
    %v288 = vld [vmem:[%s278 + $0x48] sm:$0xff]
    %v289 = vld [vmem:[%s278 + $0x50] sm:$0xff]
    %v290 = vld [vmem:[%s278 + $0x58] sm:$0xff]
    %v291 = vld [vmem:[%s278 + $0x60] sm:$0xff]
    %v292 = vld [vmem:[%s278 + $0x68] sm:$0xff]
    %v293 = vld [vmem:[%s278 + $0x70] sm:$0xff]
    %v294 = vld [vmem:[%s278 + $0x78] sm:$0xff]
    %295 = vmatprep.subr.mxu0 0.0
    %296 = vmatpush1.msra.mxu0 %v279
    %297 = vmatprep.subr.mxu0 0.0
    %298 = vmatpush1.msra.mxu0 %v280
    %299 = vmatprep.subr.mxu0 0.0
    %300 = vmatpush1.msra.mxu0 %v281
    %301 = vmatprep.subr.mxu0 0.0
    %302 = vmatpush1.msra.mxu0 %v282
    %303 = vmatprep.subr.mxu0 0.0
    %304 = vmatpush1.msra.mxu0 %v283
    %305 = vmatprep.subr.mxu0 0.0
    %306 = vmatpush1.msra.mxu0 %v284
    %307 = vmatprep.subr.mxu0 0.0
    %308 = vmatpush1.msra.mxu0 %v285
    %309 = vmatprep.subr.mxu0 0.0
    %310 = vmatpush1.msra.mxu0 %v286
    %311 = vmatprep.subr.mxu0 0.0
    %312 = vmatpush1.msra.mxu0 %v287
    %313 = vmatprep.subr.mxu0 0.0
    %314 = vmatpush1.msra.mxu0 %v288
    %315 = vmatprep.subr.mxu0 0.0
    %316 = vmatpush1.msra.mxu0 %v289
    %317 = vmatprep.subr.mxu0 0.0
    %318 = vmatpush1.msra.mxu0 %v290
    %319 = vmatprep.subr.mxu0 0.0
    %320 = vmatpush1.msra.mxu0 %v291
    %321 = vmatprep.subr.mxu0 0.0
    %322 = vmatpush1.msra.mxu0 %v292
    %323 = vmatprep.subr.mxu0 0.0
    %324 = vmatpush1.msra.mxu0 %v293
    %325 = vmatprep.subr.mxu0 0.0
    %326 = vmatpush1.msra.mxu0 %v294
    %327 = vmatprep.subr.mxu0 0.0
    %328 = vmatpush1.msra.mxu0 0.0
    %329 = vmatprep.subr.mxu0 0.0
    %330 = vmatpush1.msra.mxu0 0.0
    %331 = vmatprep.subr.mxu0 0.0
    %332 = vmatpush1.msra.mxu0 0.0
    %333 = vmatprep.subr.mxu0 0.0
    %334 = vmatpush1.msra.mxu0 0.0
    %335 = vmatprep.subr.mxu0 0.0
    %336 = vmatpush1.msra.mxu0 0.0
    %337 = vmatprep.subr.mxu0 0.0
    %338 = vmatpush1.msra.mxu0 0.0
    %339 = vmatprep.subr.mxu0 0.0
    %340 = vmatpush1.msra.mxu0 0.0
    %341 = vmatprep.subr.mxu0 0.0
    %342 = vmatpush1.msra.mxu0 0.0
    %343 = vmatprep.subr.mxu0 0.0
    %344 = vmatpush1.msra.mxu0 0.0
    %345 = vmatprep.subr.mxu0 0.0
    %346 = vmatpush1.msra.mxu0 0.0
    %347 = vmatprep.subr.mxu0 0.0
    %348 = vmatpush1.msra.mxu0 0.0
    %349 = vmatprep.subr.mxu0 0.0
    %350 = vmatpush1.msra.mxu0 0.0
    %351 = vmatprep.subr.mxu0 0.0
    %352 = vmatpush1.msra.mxu0 0.0
    %353 = vmatprep.subr.mxu0 0.0
    %354 = vmatpush1.msra.mxu0 0.0
    %355 = vmatprep.subr.mxu0 0.0
    %356 = vmatpush1.msra.mxu0 0.0
    %357 = vmatprep.subr.mxu0 0.0
    %358 = vmatpush1.msra.mxu0 0.0
    %359 = vmatprep.mubr.f32.mxu0 0.0
    %360 = vmatmul.mubr.f32.gmra.mrb[0].mxu0 %v277
    %v361 = vpop.f32.mrb[0].mxu0
    %v362 = vadd.f32 0.0, %v361
    %v363 = vpop.f32.mrb[0].mxu0
    %364 = vdwg.mxu0
    %v365 = vrot.slane %v362, 4
    %v366 = vadd.f32 %v362, %v365
    %v367 = vrot.slane %v366, 2
    %v368 = vadd.f32 %v366, %v367
    %v369 = vrot.slane %v368, 1
    %v370 = vadd.f32 %v368, %v369
    %v371 = vmul.f32 %v362, %v362
    %v372 = vrot.slane %v371, 4
    %v373 = vadd.f32 %v371, %v372
    %v374 = vrot.slane %v373, 2
    %v375 = vadd.f32 %v373, %v374
    %v376 = vrot.slane %v375, 1
    %v377 = vadd.f32 %v375, %v376
    %v378 = vmul.f32 %v370, 0.125
    %v379 = vmul.f32 %v377, 0.125
    %v380 = vmul.f32 %v378, %v378
    %v381 = vsub.f32 %v379, %v380
    %v382 = vmax.f32 %v381, 0.0
    %v383 = vld [vmem:[%s2 + $0x4] sm:$0x1]
    %v384 = vadd.f32 %v382, 1e-05
    %v385 = vrsqrt.pop %v384
    %v386 = vmul.f32 %v383, %v385
    %v387 = vld [vmem:[%s2 + $0x5] sm:$0x1]
    %v388 = vmul.f32 %v378, %v386
    %v389 = vsub.f32 %v387, %v388
    %v390 = vlaneseq
    %v391 = vshrl.u32 %v390, 7
    %v392 = vsub.s32 0, %v391
    %v393 = vrot.slane %v386, %v392
    %v394 = vmul.f32 %v362, %v393
    %v395 = vlaneseq
    %v396 = vshrl.u32 %v395, 7
    %v397 = vsub.s32 0, %v396
    %v398 = vrot.slane %v389, %v397
    %v399 = vadd.f32 %v394, %v398
    %v400 = vmax.f32 %v399, 0.0
    %s401 = scalar_lea.vmem [#allocation2], 384
    %v402 = vld [vmem:[%s401] sm:$0xff]
    %v403 = vld [vmem:[%s401 + $0x8] sm:$0xff]
    %v404 = vld [vmem:[%s401 + $0x10] sm:$0xff]
    %v405 = vld [vmem:[%s401 + $0x18] sm:$0xff]
    %v406 = vld [vmem:[%s401 + $0x20] sm:$0xff]
    %v407 = vld [vmem:[%s401 + $0x28] sm:$0xff]
    %v408 = vld [vmem:[%s401 + $0x30] sm:$0xff]
    %v409 = vld [vmem:[%s401 + $0x38] sm:$0xff]
    %v410 = vld [vmem:[%s401 + $0x40] sm:$0xff]
    %v411 = vld [vmem:[%s401 + $0x48] sm:$0xff]
    %v412 = vld [vmem:[%s401 + $0x50] sm:$0xff]
    %v413 = vld [vmem:[%s401 + $0x58] sm:$0xff]
    %v414 = vld [vmem:[%s401 + $0x60] sm:$0xff]
    %v415 = vld [vmem:[%s401 + $0x68] sm:$0xff]
    %v416 = vld [vmem:[%s401 + $0x70] sm:$0xff]
    %v417 = vld [vmem:[%s401 + $0x78] sm:$0xff]
    %v418 = vld [vmem:[%s2 + $0x6] sm:$0x1]
    %v419 = vlaneseq
    %v420 = vshrl.u32 %v419, 7
    %v421 = vsub.s32 0, %v420
    %v422 = vrot.slane %v418, %v421
    %423 = vmatprep.subr.mxu0 0.0
    %424 = vmatpush1.msra.mxu0 %v402
    %425 = vmatprep.subr.mxu0 0.0
    %426 = vmatpush1.msra.mxu0 %v403
    %427 = vmatprep.subr.mxu0 0.0
    %428 = vmatpush1.msra.mxu0 %v404
    %429 = vmatprep.subr.mxu0 0.0
    %430 = vmatpush1.msra.mxu0 %v405
    %431 = vmatprep.subr.mxu0 0.0
    %432 = vmatpush1.msra.mxu0 %v406
    %433 = vmatprep.subr.mxu0 0.0
    %434 = vmatpush1.msra.mxu0 %v407
    %435 = vmatprep.subr.mxu0 0.0
    %436 = vmatpush1.msra.mxu0 %v408
    %437 = vmatprep.subr.mxu0 0.0
    %438 = vmatpush1.msra.mxu0 %v409
    %439 = vmatprep.subr.mxu0 0.0
    %440 = vmatpush1.msra.mxu0 %v410
    %441 = vmatprep.subr.mxu0 0.0
    %442 = vmatpush1.msra.mxu0 %v411
    %443 = vmatprep.subr.mxu0 0.0
    %444 = vmatpush1.msra.mxu0 %v412
    %445 = vmatprep.subr.mxu0 0.0
    %446 = vmatpush1.msra.mxu0 %v413
    %447 = vmatprep.subr.mxu0 0.0
    %448 = vmatpush1.msra.mxu0 %v414
    %449 = vmatprep.subr.mxu0 0.0
    %450 = vmatpush1.msra.mxu0 %v415
    %451 = vmatprep.subr.mxu0 0.0
    %452 = vmatpush1.msra.mxu0 %v416
    %453 = vmatprep.subr.mxu0 0.0
    %454 = vmatpush1.msra.mxu0 %v417
    %455 = vmatprep.subr.mxu0 0.0
    %456 = vmatpush1.msra.mxu0 0.0
    %457 = vmatprep.subr.mxu0 0.0
    %458 = vmatpush1.msra.mxu0 0.0
    %459 = vmatprep.subr.mxu0 0.0
    %460 = vmatpush1.msra.mxu0 0.0
    %461 = vmatprep.subr.mxu0 0.0
    %462 = vmatpush1.msra.mxu0 0.0
    %463 = vmatprep.subr.mxu0 0.0
    %464 = vmatpush1.msra.mxu0 0.0
    %465 = vmatprep.subr.mxu0 0.0
    %466 = vmatpush1.msra.mxu0 0.0
    %467 = vmatprep.subr.mxu0 0.0
    %468 = vmatpush1.msra.mxu0 0.0
    %469 = vmatprep.subr.mxu0 0.0
    %470 = vmatpush1.msra.mxu0 0.0
    %471 = vmatprep.subr.mxu0 0.0
    %472 = vmatpush1.msra.mxu0 0.0
    %473 = vmatprep.subr.mxu0 0.0
    %474 = vmatpush1.msra.mxu0 0.0
    %475 = vmatprep.subr.mxu0 0.0
    %476 = vmatpush1.msra.mxu0 0.0
    %477 = vmatprep.subr.mxu0 0.0
    %478 = vmatpush1.msra.mxu0 0.0
    %479 = vmatprep.subr.mxu0 0.0
    %480 = vmatpush1.msra.mxu0 0.0
    %481 = vmatprep.subr.mxu0 0.0
    %482 = vmatpush1.msra.mxu0 0.0
    %483 = vmatprep.subr.mxu0 0.0
    %484 = vmatpush1.msra.mxu0 0.0
    %485 = vmatprep.subr.mxu0 0.0
    %486 = vmatpush1.msra.mxu0 0.0
    %487 = vmatprep.mubr.f32.mxu0 0.0
    %488 = vmatmul.mubr.f32.gmra.mrb[0].mxu0 %v400
    %v489 = vpop.f32.mrb[0].mxu0
    %v490 = vadd.f32 %v422, %v489
    %v491 = vpop.f32.mrb[0].mxu0
    %492 = vdwg.mxu0
    %493 = vst [vmem:[#allocation6] sm:$0xff] %v490
    %s494 = scalar_lea.vmem [#allocation2], 512
    %v495 = vld [vmem:[%s494] sm:$0xff]
    %v496 = vld [vmem:[%s494 + $0x8] sm:$0xff]
    %v497 = vld [vmem:[%s494 + $0x10] sm:$0xff]
    %v498 = vld [vmem:[%s494 + $0x18] sm:$0xff]
    %v499 = vld [vmem:[%s494 + $0x20] sm:$0xff]
    %v500 = vld [vmem:[%s494 + $0x28] sm:$0xff]
    %v501 = vld [vmem:[%s494 + $0x30] sm:$0xff]
    %v502 = vld [vmem:[%s494 + $0x38] sm:$0xff]
    %v503 = vld [vmem:[%s494 + $0x40] sm:$0xff]
    %v504 = vld [vmem:[%s494 + $0x48] sm:$0xff]
    %v505 = vld [vmem:[%s494 + $0x50] sm:$0xff]
    %v506 = vld [vmem:[%s494 + $0x58] sm:$0xff]
    %v507 = vld [vmem:[%s494 + $0x60] sm:$0xff]
    %v508 = vld [vmem:[%s494 + $0x68] sm:$0xff]
    %v509 = vld [vmem:[%s494 + $0x70] sm:$0xff]
    %v510 = vld [vmem:[%s494 + $0x78] sm:$0xff]
    %511 = vmatprep.subr.mxu0 0.0
    %512 = vmatpush1.msra.mxu0 %v495
    %513 = vmatprep.subr.mxu0 0.0
    %514 = vmatpush1.msra.mxu0 %v496
    %515 = vmatprep.subr.mxu0 0.0
    %516 = vmatpush1.msra.mxu0 %v497
    %517 = vmatprep.subr.mxu0 0.0
    %518 = vmatpush1.msra.mxu0 %v498
    %519 = vmatprep.subr.mxu0 0.0
    %520 = vmatpush1.msra.mxu0 %v499
    %521 = vmatprep.subr.mxu0 0.0
    %522 = vmatpush1.msra.mxu0 %v500
    %523 = vmatprep.subr.mxu0 0.0
    %524 = vmatpush1.msra.mxu0 %v501
    %525 = vmatprep.subr.mxu0 0.0
    %526 = vmatpush1.msra.mxu0 %v502
    %527 = vmatprep.subr.mxu0 0.0
    %528 = vmatpush1.msra.mxu0 %v503
    %529 = vmatprep.subr.mxu0 0.0
    %530 = vmatpush1.msra.mxu0 %v504
    %531 = vmatprep.subr.mxu0 0.0
    %532 = vmatpush1.msra.mxu0 %v505
    %533 = vmatprep.subr.mxu0 0.0
    %534 = vmatpush1.msra.mxu0 %v506
    %535 = vmatprep.subr.mxu0 0.0
    %536 = vmatpush1.msra.mxu0 %v507
    %537 = vmatprep.subr.mxu0 0.0
    %538 = vmatpush1.msra.mxu0 %v508
    %539 = vmatprep.subr.mxu0 0.0
    %540 = vmatpush1.msra.mxu0 %v509
    %541 = vmatprep.subr.mxu0 0.0
    %542 = vmatpush1.msra.mxu0 %v510
    %543 = vmatprep.subr.mxu0 0.0
    %544 = vmatpush1.msra.mxu0 0.0
    %545 = vmatprep.subr.mxu0 0.0
    %546 = vmatpush1.msra.mxu0 0.0
    %547 = vmatprep.subr.mxu0 0.0
    %548 = vmatpush1.msra.mxu0 0.0
    %549 = vmatprep.subr.mxu0 0.0
    %550 = vmatpush1.msra.mxu0 0.0
    %551 = vmatprep.subr.mxu0 0.0
    %552 = vmatpush1.msra.mxu0 0.0
    %553 = vmatprep.subr.mxu0 0.0
    %554 = vmatpush1.msra.mxu0 0.0
    %555 = vmatprep.subr.mxu0 0.0
    %556 = vmatpush1.msra.mxu0 0.0
    %557 = vmatprep.subr.mxu0 0.0
    %558 = vmatpush1.msra.mxu0 0.0
    %559 = vmatprep.subr.mxu0 0.0
    %560 = vmatpush1.msra.mxu0 0.0
    %561 = vmatprep.subr.mxu0 0.0
    %562 = vmatpush1.msra.mxu0 0.0
    %563 = vmatprep.subr.mxu0 0.0
    %564 = vmatpush1.msra.mxu0 0.0
    %565 = vmatprep.subr.mxu0 0.0
    %566 = vmatpush1.msra.mxu0 0.0
    %567 = vmatprep.subr.mxu0 0.0
    %568 = vmatpush1.msra.mxu0 0.0
    %569 = vmatprep.subr.mxu0 0.0
    %570 = vmatpush1.msra.mxu0 0.0
    %571 = vmatprep.subr.mxu0 0.0
    %572 = vmatpush1.msra.mxu0 0.0
    %573 = vmatprep.subr.mxu0 0.0
    %574 = vmatpush1.msra.mxu0 0.0
    %575 = vmatprep.mubr.f32.mxu0 0.0
    %576 = vmatmul.mubr.f32.gmra.mrb[0].mxu0 %v490
    %v577 = vpop.f32.mrb[0].mxu0
    %v578 = vadd.f32 0.0, %v577
    %v579 = vpop.f32.mrb[0].mxu0
    %580 = vdwg.mxu0
    %v581 = vrot.slane %v578, 4
    %v582 = vadd.f32 %v578, %v581
    %v583 = vrot.slane %v582, 2
    %v584 = vadd.f32 %v582, %v583
    %v585 = vrot.slane %v584, 1
    %v586 = vadd.f32 %v584, %v585
    %v587 = vmul.f32 %v578, %v578
    %v588 = vrot.slane %v587, 4
    %v589 = vadd.f32 %v587, %v588
    %v590 = vrot.slane %v589, 2
    %v591 = vadd.f32 %v589, %v590
    %v592 = vrot.slane %v591, 1
    %v593 = vadd.f32 %v591, %v592
    %v594 = vmul.f32 %v586, 0.125
    %v595 = vmul.f32 %v593, 0.125
    %v596 = vmul.f32 %v594, %v594
    %v597 = vsub.f32 %v595, %v596
    %v598 = vmax.f32 %v597, 0.0
    %v599 = vld [vmem:[%s2 + $0x7] sm:$0x1]
    %v600 = vadd.f32 %v598, 1e-05
    %v601 = vrsqrt.pop %v600
    %v602 = vmul.f32 %v599, %v601
    %v603 = vld [vmem:[%s2 + $0x8] sm:$0x1]
    %v604 = vmul.f32 %v594, %v602
    %v605 = vsub.f32 %v603, %v604
    %v606 = vlaneseq
    %v607 = vshrl.u32 %v606, 7
    %v608 = vsub.s32 0, %v607
    %v609 = vrot.slane %v602, %v608
    %v610 = vmul.f32 %v578, %v609
    %v611 = vlaneseq
    %v612 = vshrl.u32 %v611, 7
    %v613 = vsub.s32 0, %v612
    %v614 = vrot.slane %v605, %v613
    %v615 = vadd.f32 %v610, %v614
    %v616 = vmax.f32 %v615, 0.0
    %s617 = scalar_lea.vmem [#allocation2], 640
    %v618 = vld [vmem:[%s617] sm:$0xff]
    %v619 = vld [vmem:[%s617 + $0x8] sm:$0xff]
    %v620 = vld [vmem:[%s617 + $0x10] sm:$0xff]
    %v621 = vld [vmem:[%s617 + $0x18] sm:$0xff]
    %v622 = vld [vmem:[%s617 + $0x20] sm:$0xff]
    %v623 = vld [vmem:[%s617 + $0x28] sm:$0xff]
    %v624 = vld [vmem:[%s617 + $0x30] sm:$0xff]
    %v625 = vld [vmem:[%s617 + $0x38] sm:$0xff]
    %v626 = vld [vmem:[%s617 + $0x40] sm:$0xff]
    %v627 = vld [vmem:[%s617 + $0x48] sm:$0xff]
    %v628 = vld [vmem:[%s617 + $0x50] sm:$0xff]
    %v629 = vld [vmem:[%s617 + $0x58] sm:$0xff]
    %v630 = vld [vmem:[%s617 + $0x60] sm:$0xff]
    %v631 = vld [vmem:[%s617 + $0x68] sm:$0xff]
    %v632 = vld [vmem:[%s617 + $0x70] sm:$0xff]
    %v633 = vld [vmem:[%s617 + $0x78] sm:$0xff]
    %634 = vmatprep.subr.mxu0 0.0
    %635 = vmatpush1.msra.mxu0 %v618
    %636 = vmatprep.subr.mxu0 0.0
    %637 = vmatpush1.msra.mxu0 %v619
    %638 = vmatprep.subr.mxu0 0.0
    %639 = vmatpush1.msra.mxu0 %v620
    %640 = vmatprep.subr.mxu0 0.0
    %641 = vmatpush1.msra.mxu0 %v621
    %642 = vmatprep.subr.mxu0 0.0
    %643 = vmatpush1.msra.mxu0 %v622
    %644 = vmatprep.subr.mxu0 0.0
    %645 = vmatpush1.msra.mxu0 %v623
    %646 = vmatprep.subr.mxu0 0.0
    %647 = vmatpush1.msra.mxu0 %v624
    %648 = vmatprep.subr.mxu0 0.0
    %649 = vmatpush1.msra.mxu0 %v625
    %650 = vmatprep.subr.mxu0 0.0
    %651 = vmatpush1.msra.mxu0 %v626
    %652 = vmatprep.subr.mxu0 0.0
    %653 = vmatpush1.msra.mxu0 %v627
    %654 = vmatprep.subr.mxu0 0.0
    %655 = vmatpush1.msra.mxu0 %v628
    %656 = vmatprep.subr.mxu0 0.0
    %657 = vmatpush1.msra.mxu0 %v629
    %658 = vmatprep.subr.mxu0 0.0
    %659 = vmatpush1.msra.mxu0 %v630
    %660 = vmatprep.subr.mxu0 0.0
    %661 = vmatpush1.msra.mxu0 %v631
    %662 = vmatprep.subr.mxu0 0.0
    %663 = vmatpush1.msra.mxu0 %v632
    %664 = vmatprep.subr.mxu0 0.0
    %665 = vmatpush1.msra.mxu0 %v633
    %666 = vmatprep.subr.mxu0 0.0
    %667 = vmatpush1.msra.mxu0 0.0
    %668 = vmatprep.subr.mxu0 0.0
    %669 = vmatpush1.msra.mxu0 0.0
    %670 = vmatprep.subr.mxu0 0.0
    %671 = vmatpush1.msra.mxu0 0.0
    %672 = vmatprep.subr.mxu0 0.0
    %673 = vmatpush1.msra.mxu0 0.0
    %674 = vmatprep.subr.mxu0 0.0
    %675 = vmatpush1.msra.mxu0 0.0
    %676 = vmatprep.subr.mxu0 0.0
    %677 = vmatpush1.msra.mxu0 0.0
    %678 = vmatprep.subr.mxu0 0.0
    %679 = vmatpush1.msra.mxu0 0.0
    %680 = vmatprep.subr.mxu0 0.0
    %681 = vmatpush1.msra.mxu0 0.0
    %682 = vmatprep.subr.mxu0 0.0
    %683 = vmatpush1.msra.mxu0 0.0
    %684 = vmatprep.subr.mxu0 0.0
    %685 = vmatpush1.msra.mxu0 0.0
    %686 = vmatprep.subr.mxu0 0.0
    %687 = vmatpush1.msra.mxu0 0.0
    %688 = vmatprep.subr.mxu0 0.0
    %689 = vmatpush1.msra.mxu0 0.0
    %690 = vmatprep.subr.mxu0 0.0
    %691 = vmatpush1.msra.mxu0 0.0
    %692 = vmatprep.subr.mxu0 0.0
    %693 = vmatpush1.msra.mxu0 0.0
    %694 = vmatprep.subr.mxu0 0.0
    %695 = vmatpush1.msra.mxu0 0.0
    %696 = vmatprep.subr.mxu0 0.0
    %697 = vmatpush1.msra.mxu0 0.0
    %698 = vmatprep.mubr.f32.mxu0 0.0
    %699 = vmatmul.mubr.f32.gmra.mrb[0].mxu0 %v616
    %v700 = vpop.f32.mrb[0].mxu0
    %v701 = vadd.f32 0.0, %v700
    %v702 = vpop.f32.mrb[0].mxu0
    %703 = vdwg.mxu0
    %v704 = vrot.slane %v701, 4
    %v705 = vadd.f32 %v701, %v704
    %v706 = vrot.slane %v705, 2
    %v707 = vadd.f32 %v705, %v706
    %v708 = vrot.slane %v707, 1
    %v709 = vadd.f32 %v707, %v708
    %v710 = vmul.f32 %v701, %v701
    %v711 = vrot.slane %v710, 4
    %v712 = vadd.f32 %v710, %v711
    %v713 = vrot.slane %v712, 2
    %v714 = vadd.f32 %v712, %v713
    %v715 = vrot.slane %v714, 1
    %v716 = vadd.f32 %v714, %v715
    %v717 = vmul.f32 %v709, 0.125
    %v718 = vmul.f32 %v716, 0.125
    %v719 = vmul.f32 %v717, %v717
    %v720 = vsub.f32 %v718, %v719
    %v721 = vmax.f32 %v720, 0.0
    %v722 = vld [vmem:[%s2 + $0x9] sm:$0x1]
    %v723 = vadd.f32 %v721, 1e-05
    %v724 = vrsqrt.pop %v723
    %v725 = vmul.f32 %v722, %v724
    %v726 = vld [vmem:[%s2 + $0xa] sm:$0x1]
    %v727 = vmul.f32 %v717, %v725
    %v728 = vsub.f32 %v726, %v727
    %v729 = vlaneseq
    %v730 = vshrl.u32 %v729, 7
    %v731 = vsub.s32 0, %v730
    %v732 = vrot.slane %v725, %v731
    %v733 = vmul.f32 %v701, %v732
    %v734 = vlaneseq
    %v735 = vshrl.u32 %v734, 7
    %v736 = vsub.s32 0, %v735
    %v737 = vrot.slane %v728, %v736
    %v738 = vadd.f32 %v733, %v737
    %v739 = vmax.f32 %v738, 0.0
    %s740 = scalar_lea.vmem [#allocation2], 768
    %v741 = vld [vmem:[%s740] sm:$0xff]
    %v742 = vld [vmem:[%s740 + $0x8] sm:$0xff]
    %v743 = vld [vmem:[%s740 + $0x10] sm:$0xff]
    %v744 = vld [vmem:[%s740 + $0x18] sm:$0xff]
    %v745 = vld [vmem:[%s740 + $0x20] sm:$0xff]
    %v746 = vld [vmem:[%s740 + $0x28] sm:$0xff]
    %v747 = vld [vmem:[%s740 + $0x30] sm:$0xff]
    %v748 = vld [vmem:[%s740 + $0x38] sm:$0xff]
    %v749 = vld [vmem:[%s740 + $0x40] sm:$0xff]
    %v750 = vld [vmem:[%s740 + $0x48] sm:$0xff]
    %v751 = vld [vmem:[%s740 + $0x50] sm:$0xff]
    %v752 = vld [vmem:[%s740 + $0x58] sm:$0xff]
    %v753 = vld [vmem:[%s740 + $0x60] sm:$0xff]
    %v754 = vld [vmem:[%s740 + $0x68] sm:$0xff]
    %v755 = vld [vmem:[%s740 + $0x70] sm:$0xff]
    %v756 = vld [vmem:[%s740 + $0x78] sm:$0xff]
    %757 = vmatprep.subr.mxu0 0.0
    %758 = vmatpush1.msra.mxu0 %v741
    %759 = vmatprep.subr.mxu0 0.0
    %760 = vmatpush1.msra.mxu0 %v742
    %761 = vmatprep.subr.mxu0 0.0
    %762 = vmatpush1.msra.mxu0 %v743
    %763 = vmatprep.subr.mxu0 0.0
    %764 = vmatpush1.msra.mxu0 %v744
    %765 = vmatprep.subr.mxu0 0.0
    %766 = vmatpush1.msra.mxu0 %v745
    %767 = vmatprep.subr.mxu0 0.0
    %768 = vmatpush1.msra.mxu0 %v746
    %769 = vmatprep.subr.mxu0 0.0
    %770 = vmatpush1.msra.mxu0 %v747
    %771 = vmatprep.subr.mxu0 0.0
    %772 = vmatpush1.msra.mxu0 %v748
    %773 = vmatprep.subr.mxu0 0.0
    %774 = vmatpush1.msra.mxu0 %v749
    %775 = vmatprep.subr.mxu0 0.0
    %776 = vmatpush1.msra.mxu0 %v750
    %777 = vmatprep.subr.mxu0 0.0
    %778 = vmatpush1.msra.mxu0 %v751
    %779 = vmatprep.subr.mxu0 0.0
    %780 = vmatpush1.msra.mxu0 %v752
    %781 = vmatprep.subr.mxu0 0.0
    %782 = vmatpush1.msra.mxu0 %v753
    %783 = vmatprep.subr.mxu0 0.0
    %784 = vmatpush1.msra.mxu0 %v754
    %785 = vmatprep.subr.mxu0 0.0
    %786 = vmatpush1.msra.mxu0 %v755
    %787 = vmatprep.subr.mxu0 0.0
    %788 = vmatpush1.msra.mxu0 %v756
    %789 = vmatprep.subr.mxu0 0.0
    %790 = vmatpush1.msra.mxu0 0.0
    %791 = vmatprep.subr.mxu0 0.0
    %792 = vmatpush1.msra.mxu0 0.0
    %793 = vmatprep.subr.mxu0 0.0
    %794 = vmatpush1.msra.mxu0 0.0
    %795 = vmatprep.subr.mxu0 0.0
    %796 = vmatpush1.msra.mxu0 0.0
    %797 = vmatprep.subr.mxu0 0.0
    %798 = vmatpush1.msra.mxu0 0.0
    %799 = vmatprep.subr.mxu0 0.0
    %800 = vmatpush1.msra.mxu0 0.0
    %801 = vmatprep.subr.mxu0 0.0
    %802 = vmatpush1.msra.mxu0 0.0
    %803 = vmatprep.subr.mxu0 0.0
    %804 = vmatpush1.msra.mxu0 0.0
    %805 = vmatprep.subr.mxu0 0.0
    %806 = vmatpush1.msra.mxu0 0.0
    %807 = vmatprep.subr.mxu0 0.0
    %808 = vmatpush1.msra.mxu0 0.0
    %809 = vmatprep.subr.mxu0 0.0
    %810 = vmatpush1.msra.mxu0 0.0
    %811 = vmatprep.subr.mxu0 0.0
    %812 = vmatpush1.msra.mxu0 0.0
    %813 = vmatprep.subr.mxu0 0.0
    %814 = vmatpush1.msra.mxu0 0.0
    %815 = vmatprep.subr.mxu0 0.0
    %816 = vmatpush1.msra.mxu0 0.0
    %817 = vmatprep.subr.mxu0 0.0
    %818 = vmatpush1.msra.mxu0 0.0
    %819 = vmatprep.subr.mxu0 0.0
    %820 = vmatpush1.msra.mxu0 0.0
    %821 = vmatprep.mubr.f32.mxu0 0.0
    %822 = vmatmul.mubr.f32.gmra.mrb[0].mxu0 %v739
    %v823 = vpop.f32.mrb[0].mxu0
    %v824 = vadd.f32 0.0, %v823
    %v825 = vpop.f32.mrb[0].mxu0
    %826 = vdwg.mxu0
    %v827 = vrot.slane %v824, 4
    %v828 = vadd.f32 %v824, %v827
    %v829 = vrot.slane %v828, 2
    %v830 = vadd.f32 %v828, %v829
    %v831 = vrot.slane %v830, 1
    %v832 = vadd.f32 %v830, %v831
    %v833 = vmul.f32 %v824, %v824
    %v834 = vrot.slane %v833, 4
    %v835 = vadd.f32 %v833, %v834
    %v836 = vrot.slane %v835, 2
    %v837 = vadd.f32 %v835, %v836
    %v838 = vrot.slane %v837, 1
    %v839 = vadd.f32 %v837, %v838
    %v840 = vmul.f32 %v832, 0.125
    %v841 = vmul.f32 %v839, 0.125
    %v842 = vmul.f32 %v840, %v840
    %v843 = vsub.f32 %v841, %v842
    %v844 = vmax.f32 %v843, 0.0
    %v845 = vld [vmem:[%s2 + $0xb] sm:$0x1]
    %v846 = vadd.f32 %v844, 1e-05
    %v847 = vrsqrt.pop %v846
    %v848 = vmul.f32 %v845, %v847
    %v849 = vld [vmem:[%s2 + $0xc] sm:$0x1]
    %v850 = vmul.f32 %v840, %v848
    %v851 = vsub.f32 %v849, %v850
    %v852 = vlaneseq
    %v853 = vshrl.u32 %v852, 7
    %v854 = vsub.s32 0, %v853
    %v855 = vrot.slane %v848, %v854
    %v856 = vmul.f32 %v824, %v855
    %v857 = vlaneseq
    %v858 = vshrl.u32 %v857, 7
    %v859 = vsub.s32 0, %v858
    %v860 = vrot.slane %v851, %v859
    %v861 = vadd.f32 %v856, %v860
    %v862 = vmax.f32 %v861, 0.0
    %s863 = scalar_lea.vmem [#allocation2], 896
    %v864 = vld [vmem:[%s863] sm:$0xff]
    %v865 = vld [vmem:[%s863 + $0x8] sm:$0xff]
    %v866 = vld [vmem:[%s863 + $0x10] sm:$0xff]
    %v867 = vld [vmem:[%s863 + $0x18] sm:$0xff]
    %v868 = vld [vmem:[%s863 + $0x20] sm:$0xff]
    %v869 = vld [vmem:[%s863 + $0x28] sm:$0xff]
    %v870 = vld [vmem:[%s863 + $0x30] sm:$0xff]
    %v871 = vld [vmem:[%s863 + $0x38] sm:$0xff]
    %v872 = vld [vmem:[%s863 + $0x40] sm:$0xff]
    %v873 = vld [vmem:[%s863 + $0x48] sm:$0xff]
    %v874 = vld [vmem:[%s863 + $0x50] sm:$0xff]
    %v875 = vld [vmem:[%s863 + $0x58] sm:$0xff]
    %v876 = vld [vmem:[%s863 + $0x60] sm:$0xff]
    %v877 = vld [vmem:[%s863 + $0x68] sm:$0xff]
    %v878 = vld [vmem:[%s863 + $0x70] sm:$0xff]
    %v879 = vld [vmem:[%s863 + $0x78] sm:$0xff]
    %v880 = vld [vmem:[%s2 + $0xd] sm:$0x1]
    %v881 = vlaneseq
    %v882 = vshrl.u32 %v881, 7
    %v883 = vsub.s32 0, %v882
    %v884 = vrot.slane %v880, %v883
    %885 = vmatprep.subr.mxu0 0.0
    %886 = vmatpush1.msra.mxu0 %v864
    %887 = vmatprep.subr.mxu0 0.0
    %888 = vmatpush1.msra.mxu0 %v865
    %889 = vmatprep.subr.mxu0 0.0
    %890 = vmatpush1.msra.mxu0 %v866
    %891 = vmatprep.subr.mxu0 0.0
    %892 = vmatpush1.msra.mxu0 %v867
    %893 = vmatprep.subr.mxu0 0.0
    %894 = vmatpush1.msra.mxu0 %v868
    %895 = vmatprep.subr.mxu0 0.0
    %896 = vmatpush1.msra.mxu0 %v869
    %897 = vmatprep.subr.mxu0 0.0
    %898 = vmatpush1.msra.mxu0 %v870
    %899 = vmatprep.subr.mxu0 0.0
    %900 = vmatpush1.msra.mxu0 %v871
    %901 = vmatprep.subr.mxu0 0.0
    %902 = vmatpush1.msra.mxu0 %v872
    %903 = vmatprep.subr.mxu0 0.0
    %904 = vmatpush1.msra.mxu0 %v873
    %905 = vmatprep.subr.mxu0 0.0
    %906 = vmatpush1.msra.mxu0 %v874
    %907 = vmatprep.subr.mxu0 0.0
    %908 = vmatpush1.msra.mxu0 %v875
    %909 = vmatprep.subr.mxu0 0.0
    %910 = vmatpush1.msra.mxu0 %v876
    %911 = vmatprep.subr.mxu0 0.0
    %912 = vmatpush1.msra.mxu0 %v877
    %913 = vmatprep.subr.mxu0 0.0
    %914 = vmatpush1.msra.mxu0 %v878
    %915 = vmatprep.subr.mxu0 0.0
    %916 = vmatpush1.msra.mxu0 %v879
    %917 = vmatprep.subr.mxu0 0.0
    %918 = vmatpush1.msra.mxu0 0.0
    %919 = vmatprep.subr.mxu0 0.0
    %920 = vmatpush1.msra.mxu0 0.0
    %921 = vmatprep.subr.mxu0 0.0
    %922 = vmatpush1.msra.mxu0 0.0
    %923 = vmatprep.subr.mxu0 0.0
    %924 = vmatpush1.msra.mxu0 0.0
    %925 = vmatprep.subr.mxu0 0.0
    %926 = vmatpush1.msra.mxu0 0.0
    %927 = vmatprep.subr.mxu0 0.0
    %928 = vmatpush1.msra.mxu0 0.0
    %929 = vmatprep.subr.mxu0 0.0
    %930 = vmatpush1.msra.mxu0 0.0
    %931 = vmatprep.subr.mxu0 0.0
    %932 = vmatpush1.msra.mxu0 0.0
    %933 = vmatprep.subr.mxu0 0.0
    %934 = vmatpush1.msra.mxu0 0.0
    %935 = vmatprep.subr.mxu0 0.0
    %936 = vmatpush1.msra.mxu0 0.0
    %937 = vmatprep.subr.mxu0 0.0
    %938 = vmatpush1.msra.mxu0 0.0
    %939 = vmatprep.subr.mxu0 0.0
    %940 = vmatpush1.msra.mxu0 0.0
    %941 = vmatprep.subr.mxu0 0.0
    %942 = vmatpush1.msra.mxu0 0.0
    %943 = vmatprep.subr.mxu0 0.0
    %944 = vmatpush1.msra.mxu0 0.0
    %945 = vmatprep.subr.mxu0 0.0
    %946 = vmatpush1.msra.mxu0 0.0
    %947 = vmatprep.subr.mxu0 0.0
    %948 = vmatpush1.msra.mxu0 0.0
    %949 = vmatprep.mubr.f32.mxu0 0.0
    %950 = vmatmul.mubr.f32.gmra.mrb[0].mxu0 %v862
    %v951 = vpop.f32.mrb[0].mxu0
    %v952 = vadd.f32 %v884, %v951
    %v953 = vpop.f32.mrb[0].mxu0
    %954 = vdwg.mxu0
    %955 = vst [vmem:[#allocation5] sm:$0xff] %v952
    // Predicated region
    $region18: #{ae_forward_padded.1} parent=1 // pred_check
      _
    $region19: #{ae_forward_padded.1} parent=1 // pred_check_branch
      %957 = sbr.rel (0) target = $region21
    $region20: #{ae_forward_padded.1} parent=1 // pred_region
      %s959 = ssub.s32 128, 128
      %960 = vsyncadd [#allocation4], %s959
      %s962 = sshll.u32 [#allocation5], 4
      %s963 = int_to_ptr.vmem [resolvable:$true] %s962
      %965 = dma.vmem_to_hbm [thread:$0]  %s963, 128, %s3, [#allocation4]
    $region21: #{ae_forward_padded.1} parent=1 // pred_fallthru
      _
    // Predicated region
    $region22: #{ae_forward_padded.1} parent=1 // pred_check
      _
    $region23: #{ae_forward_padded.1} parent=1 // pred_check_branch
      %967 = sbr.rel (0) target = $region25
    $region24: #{ae_forward_padded.1} parent=1 // pred_region
      %s969 = ssub.s32 128, 128
      %970 = vsyncadd [#allocation7], %s969
      %s972 = sshll.u32 [#allocation6], 4
      %s973 = int_to_ptr.vmem [resolvable:$true] %s972
      %975 = dma.vmem_to_hbm [thread:$0]  %s973, 128, %s4, [#allocation7]
    $region25: #{ae_forward_padded.1} parent=1 // pred_fallthru
      _
    // Predicated region
    $region26: #{ae_forward_padded.1} parent=1 // pred_check
      _
    $region27: #{ae_forward_padded.1} parent=1 // pred_check_branch
      %977 = sbr.rel (0) target = $region29
    $region28: #{ae_forward_padded.1} parent=1 // pred_region
      %978 = dma.done [#allocation4], 128
    $region29: #{ae_forward_padded.1} parent=1 // pred_fallthru
      _
    // Predicated region
    $region30: #{ae_forward_padded.1} parent=1 // pred_check
      _
    $region31: #{ae_forward_padded.1} parent=1 // pred_check_branch
      %980 = sbr.rel (0) target = $region33
    $region32: #{ae_forward_padded.1} parent=1 // pred_region
      %981 = dma.done [#allocation7], 128
    $region33: #{ae_forward_padded.1} parent=1 // pred_fallthru
      _
    %982 = vsyncpa [#allocation3], 1
    %983 = vsyncpa [#allocation4], 1
    %984 = vsyncpa [#allocation7], 1

</llo_original>
